<compile_context>
chip_gen: v7x
topology: tpu7x:2x2x1
jax: 0.10.0
libtpu: 0.0.40
codegen_flags: <defaults>
</compile_context>

<pallas_src>
import jax
import jax.numpy as jnp
from jax.experimental import pallas as pl
from jax.experimental.pallas import tpu as pltpu


def _sigmoid(z):
    # tanh-form sigmoid: a single EUP transcendental per element (vs exp + divide).
    return 0.5 * (jnp.tanh(0.5 * z) + 1.0)


def mnetme_kernel(x_ref, w1_ref, b1_ref, w2_ref, b2_ref, o_ref):
    # Cast raw f32 activations to the MXU compute dtype in VMEM (no extra HBM pass).
    xb = x_ref[...].astype(w1_ref.dtype)
    # Layer 1: MXU matmul (bf16 operands, f32 accumulate), bias + sigmoid in f32.
    h = jnp.dot(xb, w1_ref[...], preferred_element_type=jnp.float32)
    h = _sigmoid(h + b1_ref[...])                      # (1, hid) bias broadcasts over rows
    # Layer 2: round activations to bf16 for the MXU, accumulate in f32.
    y = jnp.dot(h.astype(w2_ref.dtype), w2_ref[...], preferred_element_type=jnp.float32)
    o_ref[...] = _sigmoid(y + b2_ref[...]).astype(o_ref.dtype)


def _round_up(x, m):
    return (x + m - 1) // m * m


def _select_tile_m(B, requested):
    """Pick a batch tile: whole (8-aligned) batch if small, else keep >=4 grid steps
    where possible (v7x megacore sharding) without dropping below 512 rows/step."""
    b8 = _round_up(B, 8)
    if b8 <= requested:
        return b8                                     # single tile covers the whole batch
    tile = requested
    while tile >= 1024 and b8 // tile < 4:
        tile //= 2
    return tile


def mnetme_forward(x, w1, b1, w2, b2, *, tile_m=1024, compute_dtype=jnp.bfloat16):
    """x: (B, in) f32; w1: (in, hidden); b1: (1, hidden); w2: (hidden, out); b2: (1, out)."""
    B, in_dim = x.shape
    hidden = w1.shape[1]
    out_dim = w2.shape[1]
    f32 = jnp.float32

    tile_m = _select_tile_m(B, tile_m)
    B_p = _round_up(B, tile_m)

    # Only the batch dim is ever padded (zero rows at the end); feature dims stay unpadded
    # and use the full-last-dim BlockSpec exception. Zero rows just produce ignored output.
    xp = x if B_p == B else jnp.zeros((B_p, in_dim), x.dtype).at[:B].set(x)

    w1c = w1.astype(compute_dtype)
    w2c = w2.astype(compute_dtype)
    b1c = b1.reshape(1, hidden).astype(f32)
    b2c = b2.reshape(1, out_dim).astype(f32)

    grid = (B_p // tile_m,)
    out = pl.pallas_call(
        mnetme_kernel,
        out_shape=jax.ShapeDtypeStruct((B_p, out_dim), f32),
        grid_spec=pl.GridSpec(
            grid=grid,
            in_specs=[
                pl.BlockSpec((tile_m, in_dim), lambda i: (i, 0)),    # x tile, raw f32
                pl.BlockSpec((in_dim, hidden), lambda i: (0, 0)),    # W1 (VMEM-resident)
                pl.BlockSpec((1, hidden), lambda i: (0, 0)),         # b1 (resident)
                pl.BlockSpec((hidden, out_dim), lambda i: (0, 0)),   # W2 (resident)
                pl.BlockSpec((1, out_dim), lambda i: (0, 0)),        # b2 (resident)
            ],
            out_specs=pl.BlockSpec((tile_m, out_dim), lambda i: (i, 0)),  # narrow f32 output
        ),
        compiler_params=pltpu.CompilerParams(
            dimension_semantics=("parallel",),      # shards batch across v7x's 2 TCs
            vmem_limit_bytes=32 * 1024 * 1024,      # headroom on v5e/v6e/v7x; footprint is tiny
        ),
    )(xp, w1c, b1c, w2c, b2c)

    out = out if B_p == B else out[:B]
    return out.astype(x.dtype)


def init_params(key, input_size, hidden_size, output_size):
    # Deterministic init mimicking PyTorch nn.Linear: U(-1/sqrt(fan_in), +1/sqrt(fan_in)).
    k1, k2, k3, k4 = jax.random.split(key, 4)
    lim1 = 1.0 / (input_size ** 0.5)
    lim2 = 1.0 / (hidden_size ** 0.5)
    w1 = jax.random.uniform(k1, (input_size, hidden_size), jnp.float32, -lim1, lim1)
    b1 = jax.random.uniform(k2, (1, hidden_size), jnp.float32, -lim1, lim1)
    w2 = jax.random.uniform(k3, (hidden_size, output_size), jnp.float32, -lim2, lim2)
    b2 = jax.random.uniform(k4, (1, output_size), jnp.float32, -lim2, lim2)
    return w1, b1, w2, b2


if __name__ == "__main__":
    input_size, hidden_size, output_size = 32, 64, 16
    batch = 64   # small test batch -> single tile; large batches get >=4 grid steps

    key = jax.random.PRNGKey(0)
    kx, kp = jax.random.split(key)
    x = jax.random.normal(kx, (batch, input_size), jnp.float32)
    w1, b1, w2, b2 = init_params(kp, input_size, hidden_size, output_size)

    out = mnetme_forward(x, w1, b1, w2, b2)
    out = jax.block_until_ready(out)

    # Pure-JAX reference with the same numerics the kernel uses: bf16 matmul operands,
    # f32 accumulation / bias / sigmoid. (This validates kernel-vs-matching-numerics,
    # not against a full-f32 PyTorch baseline.)
    def bf(a):
        return a.astype(jnp.bfloat16).astype(jnp.float32)

    h_ref = jax.nn.sigmoid(bf(x) @ bf(w1) + b1)
    ref = jax.nn.sigmoid(bf(h_ref) @ bf(w2) + b2)

    assert out.shape == (batch, output_size)
    assert out.dtype == x.dtype
    assert jnp.allclose(out, ref, atol=2e-3, rtol=2e-3), float(jnp.max(jnp.abs(out - ref)))

    print("KERNEL_OK")
</pallas_src>

<mosaic_0001>
module attributes {stable_mosaic.version = 11 : i64} {
  func.func @mnetme_kernel(%arg0: i32, %arg1: memref<64x32xf32, #tpu.memory_space<vmem>>, %arg2: memref<32x64xbf16, #tpu.memory_space<vmem>>, %arg3: memref<1x64xf32, #tpu.memory_space<vmem>>, %arg4: memref<64x16xbf16, #tpu.memory_space<vmem>>, %arg5: memref<1x16xf32, #tpu.memory_space<vmem>>, %arg6: memref<64x16xf32, #tpu.memory_space<vmem>>) attributes {dimension_semantics = [#tpu.dimension_semantics<parallel>], iteration_bounds = array<i64: 1>, scalar_prefetch = 0 : i64, scratch_operands = 0 : i64, tpu.core_type = #tpu.core_type<tc>, window_params = [{transform_indices = @transform_0, window_bounds = array<i64: 64, 32>}, {pipeline_mode = #tpu.pipeline_mode<synchronous>, transform_indices = @transform_1, window_bounds = array<i64: 32, 64>}, {pipeline_mode = #tpu.pipeline_mode<synchronous>, transform_indices = @transform_2, window_bounds = array<i64: 1, 64>}, {pipeline_mode = #tpu.pipeline_mode<synchronous>, transform_indices = @transform_3, window_bounds = array<i64: 64, 16>}, {pipeline_mode = #tpu.pipeline_mode<synchronous>, transform_indices = @transform_4, window_bounds = array<i64: 1, 16>}, {transform_indices = @transform_5, window_bounds = array<i64: 64, 16>}]} {
    %c0 = arith.constant 0 : index
    %c0_0 = arith.constant 0 : index
    %0 = vector.load %arg1[%c0, %c0_0] : memref<64x32xf32, #tpu.memory_space<vmem>>, vector<64x32xf32>
    %1 = arith.truncf %0 : vector<64x32xf32> to vector<64x32xbf16>
    %c0_1 = arith.constant 0 : index
    %c0_2 = arith.constant 0 : index
    %2 = vector.load %arg2[%c0_1, %c0_2] : memref<32x64xbf16, #tpu.memory_space<vmem>>, vector<32x64xbf16>
    %cst = arith.constant dense<0.000000e+00> : vector<64x64xf32>
    %3 = tpu.matmul %1, %2, %cst {dimension_numbers = #tpu.dot_dimension_numbers<[1], [0], [0], [1], [0, 0, 1, 1], [], []>} : vector<64x32xbf16>, vector<32x64xbf16>, vector<64x64xf32> -> vector<64x64xf32>
    %c0_3 = arith.constant 0 : index
    %c0_4 = arith.constant 0 : index
    %4 = vector.load %arg3[%c0_3, %c0_4] : memref<1x64xf32, #tpu.memory_space<vmem>>, vector<1x64xf32>
    %5 = vector.broadcast %4 : vector<1x64xf32> to vector<64x64xf32>
    %6 = arith.addf %3, %5 : vector<64x64xf32>
    %cst_5 = arith.constant 5.000000e-01 : f32
    %7 = vector.broadcast %cst_5 : f32 to vector<64x64xf32>
    %8 = arith.mulf %7, %6 : vector<64x64xf32>
    %9 = math.tanh %8 : vector<64x64xf32>
    %cst_6 = arith.constant 1.000000e+00 : f32
    %10 = vector.broadcast %cst_6 : f32 to vector<64x64xf32>
    %11 = arith.addf %9, %10 : vector<64x64xf32>
    %cst_7 = arith.constant 5.000000e-01 : f32
    %12 = vector.broadcast %cst_7 : f32 to vector<64x64xf32>
    %13 = arith.mulf %12, %11 : vector<64x64xf32>
    %14 = arith.truncf %13 : vector<64x64xf32> to vector<64x64xbf16>
    %c0_8 = arith.constant 0 : index
    %c0_9 = arith.constant 0 : index
    %15 = vector.load %arg4[%c0_8, %c0_9] : memref<64x16xbf16, #tpu.memory_space<vmem>>, vector<64x16xbf16>
    %cst_10 = arith.constant dense<0.000000e+00> : vector<64x16xf32>
    %16 = tpu.matmul %14, %15, %cst_10 {dimension_numbers = #tpu.dot_dimension_numbers<[1], [0], [0], [1], [0, 0, 1, 1], [], []>} : vector<64x64xbf16>, vector<64x16xbf16>, vector<64x16xf32> -> vector<64x16xf32>
    %c0_11 = arith.constant 0 : index
    %c0_12 = arith.constant 0 : index
    %17 = vector.load %arg5[%c0_11, %c0_12] : memref<1x16xf32, #tpu.memory_space<vmem>>, vector<1x16xf32>
    %18 = vector.broadcast %17 : vector<1x16xf32> to vector<64x16xf32>
    %19 = arith.addf %16, %18 : vector<64x16xf32>
    %cst_13 = arith.constant 5.000000e-01 : f32
    %20 = vector.broadcast %cst_13 : f32 to vector<64x16xf32>
    %21 = arith.mulf %20, %19 : vector<64x16xf32>
    %22 = math.tanh %21 : vector<64x16xf32>
    %cst_14 = arith.constant 1.000000e+00 : f32
    %23 = vector.broadcast %cst_14 : f32 to vector<64x16xf32>
    %24 = arith.addf %22, %23 : vector<64x16xf32>
    %cst_15 = arith.constant 5.000000e-01 : f32
    %25 = vector.broadcast %cst_15 : f32 to vector<64x16xf32>
    %26 = arith.mulf %25, %24 : vector<64x16xf32>
    %c0_16 = arith.constant 0 : index
    %c0_17 = arith.constant 0 : index
    %27 = vector.load %arg6[%c0_16, %c0_17] : memref<64x16xf32, #tpu.memory_space<vmem>>, vector<64x16xf32>
    tpu.vector_store %arg6[%c0_16, %c0_17], %26 {strides = array<i32>} : memref<64x16xf32, #tpu.memory_space<vmem>>, vector<64x16xf32>,
    return
  }
  func.func @transform_0(%arg0: i32) -> (i32, i32) {
    %c0_i32 = arith.constant 0 : i32
    %c0_i32_0 = arith.constant 0 : i32
    return %arg0, %c0_i32 : i32, i32
  }
  func.func @transform_1(%arg0: i32) -> (i32, i32) {
    %c0_i32 = arith.constant 0 : i32
    %c0_i32_0 = arith.constant 0 : i32
    %c0_i32_1 = arith.constant 0 : i32
    return %c0_i32, %c0_i32_0 : i32, i32
  }
  func.func @transform_2(%arg0: i32) -> (i32, i32) {
    %c0_i32 = arith.constant 0 : i32
    %c0_i32_0 = arith.constant 0 : i32
    %c0_i32_1 = arith.constant 0 : i32
    return %c0_i32, %c0_i32_0 : i32, i32
  }
  func.func @transform_3(%arg0: i32) -> (i32, i32) {
    %c0_i32 = arith.constant 0 : i32
    %c0_i32_0 = arith.constant 0 : i32
    %c0_i32_1 = arith.constant 0 : i32
    return %c0_i32, %c0_i32_0 : i32, i32
  }
  func.func @transform_4(%arg0: i32) -> (i32, i32) {
    %c0_i32 = arith.constant 0 : i32
    %c0_i32_0 = arith.constant 0 : i32
    %c0_i32_1 = arith.constant 0 : i32
    return %c0_i32, %c0_i32_0 : i32, i32
  }
  func.func @transform_5(%arg0: i32) -> (i32, i32) {
    %c0_i32 = arith.constant 0 : i32
    %c0_i32_0 = arith.constant 0 : i32
    return %arg0, %c0_i32 : i32, i32
  }
}

</mosaic_0001>

<llo_original>
// kernel: tpu_custom_call.1
$region0: #{tpu_custom_call.1}
  #allocation0 [shape = 'u32[]', space=smem, size = 0x4, offset = 0x4, fixed_abs, tag = 'smem constant byte address 0x4 - core index']
  #allocation1 [shape = 'u32[144,128]{1,0:T(1,128)}', space=vmem, size = 0x12000, scoped, tag = 'internal scratch']
  %s0 = inlined_call_operand.vmem [shape: f32[64,32], index: 0, kind: input, shape index: {}]
  %s1 = inlined_call_operand.vmem [shape: bf16[32,64], index: 1, kind: input, shape index: {}]
  %s2 = inlined_call_operand.vmem [shape: f32[1,64], index: 2, kind: input, shape index: {}]
  %s3 = inlined_call_operand.vmem [shape: bf16[64,16], index: 3, kind: input, shape index: {}]
  %s4 = inlined_call_operand.vmem [shape: f32[1,16], index: 4, kind: input, shape index: {}]
  %s5 = inlined_call_operand.vmem [shape: f32[64,16], index: 5, kind: output, shape index: {}]
  %s6 = sld [smem:[#allocation0]]
  $region30: #{tpu_custom_call.1} parent=0
    _
  %s8 = ssub.s32 1, %s6
  %s9 = scalar_select 0, %s8, %s6
  // Predicated region
  $region2: #{tpu_custom_call.1} parent=0 // pred_check
    _
  $region3: #{tpu_custom_call.1} parent=0 // pred_check_branch
    %11 = sbr.rel (0) target = $region5
  $region4: #{tpu_custom_call.1} parent=0 // pred_region
    _
  $region5: #{tpu_custom_call.1} parent=0 // pred_fallthru
    _
  // Predicated region
  $region6: #{tpu_custom_call.1} parent=0 // pred_check
    _
  $region7: #{tpu_custom_call.1} parent=0 // pred_check_branch
    %13 = sbr.rel (0) target = $region9
  $region8: #{tpu_custom_call.1} parent=0 // pred_region
    _
  $region9: #{tpu_custom_call.1} parent=0 // pred_fallthru
    _
  // Predicated region
  $region10: #{tpu_custom_call.1} parent=0 // pred_check
    _
  $region11: #{tpu_custom_call.1} parent=0 // pred_check_branch
    %15 = sbr.rel (0) target = $region13
  $region12: #{tpu_custom_call.1} parent=0 // pred_region
    _
  $region13: #{tpu_custom_call.1} parent=0 // pred_fallthru
    _
  // Predicated region
  $region14: #{tpu_custom_call.1} parent=0 // pred_check
    _
  $region15: #{tpu_custom_call.1} parent=0 // pred_check_branch
    %17 = sbr.rel (0) target = $region17
  $region16: #{tpu_custom_call.1} parent=0 // pred_region
    _
  $region17: #{tpu_custom_call.1} parent=0 // pred_fallthru
    _
  // Predicated region
  $region18: #{tpu_custom_call.1} parent=0 // pred_check
    _
  $region19: #{tpu_custom_call.1} parent=0 // pred_check_branch
    %19 = sbr.rel (0) target = $region21
  $region20: #{tpu_custom_call.1} parent=0 // pred_region
    _
  $region21: #{tpu_custom_call.1} parent=0 // pred_fallthru
    _
  %v21 = vld [vmem:[%s0] sm:$0xff]
  %v22 = vld [vmem:[%s0 + $0x8] sm:$0xff]
  %v23 = vld [vmem:[%s0 + $0x10] sm:$0xff]
  %v24 = vld [vmem:[%s0 + $0x18] sm:$0xff]
  %v25 = vld [vmem:[%s0 + $0x20] sm:$0xff]
  %v26 = vld [vmem:[%s0 + $0x28] sm:$0xff]
  %v27 = vld [vmem:[%s0 + $0x30] sm:$0xff]
  %v28 = vld [vmem:[%s0 + $0x38] sm:$0xff]
  %v29 = vpack.c.bf16 %v22, %v21
  %v30 = vpack.c.bf16 %v24, %v23
  %v31 = vpack.c.bf16 %v26, %v25
  %v32 = vpack.c.bf16 %v28, %v27
  %v33 = vld [vmem:[%s1] sm:$0xf]
  %v34 = vld [vmem:[%s1 + $0x4] sm:$0xf]
  %v35 = vld [vmem:[%s1 + $0x8] sm:$0xf]
  %v36 = vld [vmem:[%s1 + $0xc] sm:$0xf]
  %v37 = vld [vmem:[%s2] sm:$0x1]
  %v39 = vlaneseq
  %v40 = vshrl.u32 %v39, 7
  %v41 = vsub.s32 0, %v40
  %v42 = vrot.slane %v37, %v41
  %v48 = vunpack.c.l.b16 %v33
  %v49 = vunpack.c.l.b16 %v34
  %v50 = vunpack.c.l.b16 %v35
  %v51 = vunpack.c.l.b16 %v36
  %v52 = vpack.c.b16 %v49, %v48
  %v53 = vpack.c.b16 %v51, %v50
  %vm56 = vcmask 261120
  %v58 = vsel %vm56, %v29, 0
  %v61 = vsel %vm56, %v30, 0
  %v64 = vsel %vm56, %v31, 0
  %v67 = vsel %vm56, %v32, 0
  %69 = vmatprep.subr.bf16.mxu0 0
  %70 = vmatpush1.bf16.msra.mxu0 %v52
  %71 = vmatprep.subr.bf16.mxu0 0
  %72 = vmatpush1.bf16.msra.mxu0 %v53
  %73 = vmatprep.subr.bf16.mxu0 0
  %74 = vmatpush1.bf16.msra.mxu0 0
  %75 = vmatprep.subr.bf16.mxu0 0
  %76 = vmatpush1.bf16.msra.mxu0 0
  %77 = vmatprep.subr.bf16.mxu0 0
  %78 = vmatpush1.bf16.msra.mxu0 0
  %79 = vmatprep.subr.bf16.mxu0 0
  %80 = vmatpush1.bf16.msra.mxu0 0
  %81 = vmatprep.subr.bf16.mxu0 0
  %82 = vmatpush1.bf16.msra.mxu0 0
  %83 = vmatprep.subr.bf16.mxu0 0
  %84 = vmatpush1.bf16.msra.mxu0 0
  %85 = vmatprep.subr.bf16.mxu0 0
  %86 = vmatpush1.bf16.msra.mxu0 0
  %87 = vmatprep.subr.bf16.mxu0 0
  %88 = vmatpush1.bf16.msra.mxu0 0
  %89 = vmatprep.subr.bf16.mxu0 0
  %90 = vmatpush1.bf16.msra.mxu0 0
  %91 = vmatprep.subr.bf16.mxu0 0
  %92 = vmatpush1.bf16.msra.mxu0 0
  %93 = vmatprep.subr.bf16.mxu0 0
  %94 = vmatpush1.bf16.msra.mxu0 0
  %95 = vmatprep.subr.bf16.mxu0 0
  %96 = vmatpush1.bf16.msra.mxu0 0
  %97 = vmatprep.subr.bf16.mxu0 0
  %98 = vmatpush1.bf16.msra.mxu0 0
  %99 = vmatprep.subr.bf16.mxu0 0
  %100 = vmatpush1.bf16.msra.mxu0 0
  %101 = vmatprep.mubr.bf16.mxu0 0
  %102 = vmatmul.mubr.bf16.gmra.mrb[0].mxu0 %v58
  %v103 = vpop.f32.mrb[0].mxu0
  %v104 = vadd.f32 %v42, %v103
  %v105 = vpop.f32.mrb[0].mxu0
  %v106 = vpop.f32.mrb[0].mxu0
  %v107 = vadd.f32 %v42, %v106
  %v108 = vpop.f32.mrb[0].mxu0
  %109 = vmatprep.mubr.bf16.mxu0 0
  %110 = vmatmul.mubr.bf16.gmra.mrb[0].mxu0 %v61
  %v111 = vpop.f32.mrb[0].mxu0
  %v112 = vadd.f32 %v42, %v111
  %v113 = vpop.f32.mrb[0].mxu0
  %v114 = vpop.f32.mrb[0].mxu0
  %v115 = vadd.f32 %v42, %v114
  %v116 = vpop.f32.mrb[0].mxu0
  %117 = vmatprep.mubr.bf16.mxu0 0
  %118 = vmatmul.mubr.bf16.gmra.mrb[0].mxu0 %v64
  %v119 = vpop.f32.mrb[0].mxu0
  %v120 = vadd.f32 %v42, %v119
  %v121 = vpop.f32.mrb[0].mxu0
  %v122 = vpop.f32.mrb[0].mxu0
  %v123 = vadd.f32 %v42, %v122
  %v124 = vpop.f32.mrb[0].mxu0
  %125 = vmatprep.mubr.bf16.mxu0 0
  %126 = vmatmul.mubr.bf16.gmra.mrb[0].mxu0 %v67
  %v127 = vpop.f32.mrb[0].mxu0
  %v128 = vadd.f32 %v42, %v127
  %v129 = vpop.f32.mrb[0].mxu0
  %v130 = vpop.f32.mrb[0].mxu0
  %v131 = vadd.f32 %v42, %v130
  %v132 = vpop.f32.mrb[0].mxu0
  %133 = vdwg.mxu0
  %v134 = vmul.f32 %v104, 0.5
  %v135 = vmul.f32 %v107, 0.5
  %v136 = vmul.f32 %v112, 0.5
  %v137 = vmul.f32 %v115, 0.5
  %v138 = vmul.f32 %v120, 0.5
  %v139 = vmul.f32 %v123, 0.5
  %v140 = vmul.f32 %v128, 0.5
  %v141 = vmul.f32 %v131, 0.5
  %v142 = vtanh.pop %v134
  %v143 = vtanh.pop %v135
  %v144 = vtanh.pop %v136
  %v145 = vtanh.pop %v137
  %v146 = vtanh.pop %v138
  %v147 = vtanh.pop %v139
  %v148 = vtanh.pop %v140
  %v149 = vtanh.pop %v141
  %v150 = vadd.f32 %v142, 1.0
  %v151 = vadd.f32 %v143, 1.0
  %v152 = vadd.f32 %v144, 1.0
  %v153 = vadd.f32 %v145, 1.0
  %v154 = vadd.f32 %v146, 1.0
  %v155 = vadd.f32 %v147, 1.0
  %v156 = vadd.f32 %v148, 1.0
  %v157 = vadd.f32 %v149, 1.0
  %v158 = vmul.f32 %v150, 0.5
  %v159 = vmul.f32 %v151, 0.5
  %v160 = vmul.f32 %v152, 0.5
  %v161 = vmul.f32 %v153, 0.5
  %v162 = vmul.f32 %v154, 0.5
  %v163 = vmul.f32 %v155, 0.5
  %v164 = vmul.f32 %v156, 0.5
  %v165 = vmul.f32 %v157, 0.5
  %v166 = vpack.c.bf16 %v159, %v158
  %v167 = vpack.c.bf16 %v161, %v160
  %v168 = vpack.c.bf16 %v163, %v162
  %v169 = vpack.c.bf16 %v165, %v164
  %v170 = vld [vmem:[%s3] sm:$0xf]
  %v171 = vld [vmem:[%s3 + $0x4] sm:$0xf]
  %v172 = vld [vmem:[%s3 + $0x8] sm:$0xf]
  %v173 = vld [vmem:[%s3 + $0xc] sm:$0xf]
  %v174 = vld [vmem:[%s3 + $0x10] sm:$0xf]
  %v175 = vld [vmem:[%s3 + $0x14] sm:$0xf]
  %v176 = vld [vmem:[%s3 + $0x18] sm:$0xf]
  %v177 = vld [vmem:[%s3 + $0x1c] sm:$0xf]
  %v178 = vld [vmem:[%s4] sm:$0x1]
  %v180 = vlaneseq
  %v181 = vshrl.u32 %v180, 7
  %v182 = vsub.s32 0, %v181
  %v183 = vrot.slane %v178, %v182
  %v193 = vunpack.c.l.b16 %v170
  %v194 = vunpack.c.l.b16 %v171
  %v195 = vunpack.c.l.b16 %v172
  %v196 = vunpack.c.l.b16 %v173
  %v197 = vunpack.c.l.b16 %v174
  %v198 = vunpack.c.l.b16 %v175
  %v199 = vunpack.c.l.b16 %v176
  %v200 = vunpack.c.l.b16 %v177
  %v201 = vpack.c.b16 %v194, %v193
  %v202 = vpack.c.b16 %v196, %v195
  %v203 = vpack.c.b16 %v198, %v197
  %v204 = vpack.c.b16 %v200, %v199
  %vm209 = vcmask 523264
  %v211 = vsel %vm209, %v166, 0
  %v214 = vsel %vm209, %v167, 0
  %v217 = vsel %vm209, %v168, 0
  %v220 = vsel %vm209, %v169, 0
  %222 = vmatprep.subr.bf16.mxu0 0
  %223 = vmatpush1.bf16.msra.mxu0 %v201
  %224 = vmatprep.subr.bf16.mxu0 0
  %225 = vmatpush1.bf16.msra.mxu0 %v202
  %226 = vmatprep.subr.bf16.mxu0 0
  %227 = vmatpush1.bf16.msra.mxu0 %v203
  %228 = vmatprep.subr.bf16.mxu0 0
  %229 = vmatpush1.bf16.msra.mxu0 %v204
  %230 = vmatprep.subr.bf16.mxu0 0
  %231 = vmatpush1.bf16.msra.mxu0 0
  %232 = vmatprep.subr.bf16.mxu0 0
  %233 = vmatpush1.bf16.msra.mxu0 0
  %234 = vmatprep.subr.bf16.mxu0 0
  %235 = vmatpush1.bf16.msra.mxu0 0
  %236 = vmatprep.subr.bf16.mxu0 0
  %237 = vmatpush1.bf16.msra.mxu0 0
  %238 = vmatprep.subr.bf16.mxu0 0
  %239 = vmatpush1.bf16.msra.mxu0 0
  %240 = vmatprep.subr.bf16.mxu0 0
  %241 = vmatpush1.bf16.msra.mxu0 0
  %242 = vmatprep.subr.bf16.mxu0 0
  %243 = vmatpush1.bf16.msra.mxu0 0
  %244 = vmatprep.subr.bf16.mxu0 0
  %245 = vmatpush1.bf16.msra.mxu0 0
  %246 = vmatprep.subr.bf16.mxu0 0
  %247 = vmatpush1.bf16.msra.mxu0 0
  %248 = vmatprep.subr.bf16.mxu0 0
  %249 = vmatpush1.bf16.msra.mxu0 0
  %250 = vmatprep.subr.bf16.mxu0 0
  %251 = vmatpush1.bf16.msra.mxu0 0
  %252 = vmatprep.subr.bf16.mxu0 0
  %253 = vmatpush1.bf16.msra.mxu0 0
  %254 = vmatprep.mubr.bf16.mxu0 0
  %255 = vmatmul.mubr.bf16.gmra.mrb[0].mxu0 %v211
  %v256 = vpop.f32.mrb[0].mxu0
  %v257 = vadd.f32 %v183, %v256
  %v258 = vpop.f32.mrb[0].mxu0
  %v259 = vpop.f32.mrb[0].mxu0
  %v260 = vadd.f32 %v183, %v259
  %v261 = vpop.f32.mrb[0].mxu0
  %262 = vmatprep.mubr.bf16.mxu0 0
  %263 = vmatmul.mubr.bf16.gmra.mrb[0].mxu0 %v214
  %v264 = vpop.f32.mrb[0].mxu0
  %v265 = vadd.f32 %v183, %v264
  %v266 = vpop.f32.mrb[0].mxu0
  %v267 = vpop.f32.mrb[0].mxu0
  %v268 = vadd.f32 %v183, %v267
  %v269 = vpop.f32.mrb[0].mxu0
  %270 = vmatprep.mubr.bf16.mxu0 0
  %271 = vmatmul.mubr.bf16.gmra.mrb[0].mxu0 %v217
  %v272 = vpop.f32.mrb[0].mxu0
  %v273 = vadd.f32 %v183, %v272
  %v274 = vpop.f32.mrb[0].mxu0
  %v275 = vpop.f32.mrb[0].mxu0
  %v276 = vadd.f32 %v183, %v275
  %v277 = vpop.f32.mrb[0].mxu0
  %278 = vmatprep.mubr.bf16.mxu0 0
  %279 = vmatmul.mubr.bf16.gmra.mrb[0].mxu0 %v220
  %v280 = vpop.f32.mrb[0].mxu0
  %v281 = vadd.f32 %v183, %v280
  %v282 = vpop.f32.mrb[0].mxu0
  %v283 = vpop.f32.mrb[0].mxu0
  %v284 = vadd.f32 %v183, %v283
  %v285 = vpop.f32.mrb[0].mxu0
  %286 = vdwg.mxu0
  %v287 = vmul.f32 %v257, 0.5
  %v288 = vmul.f32 %v260, 0.5
  %v289 = vmul.f32 %v265, 0.5
  %v290 = vmul.f32 %v268, 0.5
  %v291 = vmul.f32 %v273, 0.5
  %v292 = vmul.f32 %v276, 0.5
  %v293 = vmul.f32 %v281, 0.5
  %v294 = vmul.f32 %v284, 0.5
  %v295 = vtanh.pop %v287
  %v296 = vtanh.pop %v288
  %v297 = vtanh.pop %v289
  %v298 = vtanh.pop %v290
  %v299 = vtanh.pop %v291
  %v300 = vtanh.pop %v292
  %v301 = vtanh.pop %v293
  %v302 = vtanh.pop %v294
  %v303 = vadd.f32 %v295, 1.0
  %v304 = vadd.f32 %v296, 1.0
  %v305 = vadd.f32 %v297, 1.0
  %v306 = vadd.f32 %v298, 1.0
  %v307 = vadd.f32 %v299, 1.0
  %v308 = vadd.f32 %v300, 1.0
  %v309 = vadd.f32 %v301, 1.0
  %v310 = vadd.f32 %v302, 1.0
  %v311 = vmul.f32 %v303, 0.5
  %v312 = vmul.f32 %v304, 0.5
  %v313 = vmul.f32 %v305, 0.5
  %v314 = vmul.f32 %v306, 0.5
  %v315 = vmul.f32 %v307, 0.5
  %v316 = vmul.f32 %v308, 0.5
  %v317 = vmul.f32 %v309, 0.5
  %v318 = vmul.f32 %v310, 0.5
  %vm319 = vcmask 130048
  %320 = vst.msk [vmem:[%s5] sm:$0xff] %vm319, %v311
  %321 = vst.msk [vmem:[%s5 + $0x8] sm:$0xff] %vm319, %v312
  %322 = vst.msk [vmem:[%s5 + $0x10] sm:$0xff] %vm319, %v313
  %323 = vst.msk [vmem:[%s5 + $0x18] sm:$0xff] %vm319, %v314
  %324 = vst.msk [vmem:[%s5 + $0x20] sm:$0xff] %vm319, %v315
  %325 = vst.msk [vmem:[%s5 + $0x28] sm:$0xff] %vm319, %v316
  %326 = vst.msk [vmem:[%s5 + $0x30] sm:$0xff] %vm319, %v317
  %327 = vst.msk [vmem:[%s5 + $0x38] sm:$0xff] %vm319, %v318
  // Predicated region
  $region22: #{tpu_custom_call.1} parent=0 // pred_check
    _
  $region23: #{tpu_custom_call.1} parent=0 // pred_check_branch
    %329 = sbr.rel (0) target = $region25
  $region24: #{tpu_custom_call.1} parent=0 // pred_region
    _
  $region25: #{tpu_custom_call.1} parent=0 // pred_fallthru
    _
  // Predicated region
  $region26: #{tpu_custom_call.1} parent=0 // pred_check
    _
  $region27: #{tpu_custom_call.1} parent=0 // pred_check_branch
    %331 = sbr.rel (0) target = $region29
  $region28: #{tpu_custom_call.1} parent=0 // pred_region
    _
  $region29: #{tpu_custom_call.1} parent=0 // pred_fallthru
    _

</llo_original>
